<compile_context>
chip_gen: v5e
topology: v5e:2x2
jax: 0.10.0
libtpu: 0.0.40
codegen_flags: <defaults>
</compile_context>

<pallas_src>
import functools

import jax
import jax.numpy as jnp
from jax.experimental import pallas as pl
from jax.experimental.pallas import tpu as pltpu

# Keep the double-buffered kernel working set under every generation's
# default scoped-VMEM limit (16 MiB on v5e is the tightest).
_VMEM_BUDGET_BYTES = 12 * 1024 * 1024


def _branch_kernel(a_ref, w_ref, b_ref, o_ref, *, h, w):
    # a_ref: (1, C, W*H)        unpadded, HW-transposed input slab (one batch)
    # w_ref: (twout, C)         Linear weight tile (K = 5, no pad)
    # b_ref: (twout, 1)         Linear bias tile
    # o_ref: (1, twout, (W+2)*H) output slab, already in final (b, o, wp, h)
    #                           layout (flat over the last two dims)
    core = jnp.dot(w_ref[...], a_ref[0], preferred_element_type=jnp.float32)
    bias = b_ref[...]                                   # (twout, 1)
    edge = jnp.broadcast_to(bias, (bias.shape[0], h))   # hoisted, used twice

    # F.pad-then-Linear: the two zero-padded width columns come out as bias.
    o_ref[0, :, pl.ds(0, h)] = edge                     # wp = 0
    o_ref[0, :, pl.ds((w + 1) * h, h)] = edge           # wp = W + 1
    o_ref[0, :, pl.ds(h, w * h)] = core + bias          # interior: W x + b


def _pick_wout_tile(wout, c, s_in, s_out, budget_bytes):
    """Largest Wout tile (dividing Wout; multiple of 8 unless == Wout) whose
    double-buffered fp32 working set fits the VMEM budget."""
    def working_set(t):
        # input slab + weight tile + bias tile + output slab, double-buffered
        return 2 * 4 * (c * s_in + t * c + t + t * s_out)

    if working_set(wout) <= budget_bytes or wout % 8 != 0 or wout <= 8:
        return wout
    for t in range(wout - 8, 7, -8):
        if wout % t == 0 and working_set(t) <= budget_bytes:
            return t
    return 8


@jax.jit
def branch_net_forward(x, weight, bias):
    """x: (B, 5, H, W); weight: (w, 5); bias: (w,). Returns (B, w, W+2, H)."""
    B, C, H, W = x.shape
    Wout = weight.shape[0]
    Wp = W + 2
    S_in = W * H
    S_out = Wp * H

    x = x.astype(jnp.float32)
    # Only XLA-side op: H<->W transpose of the small 5-channel input.  No
    # channel pad, no width pad.  The reshape is a free dim-merge.
    a = jnp.transpose(x, (0, 1, 3, 2)).reshape(B, C, S_in)        # (B, C, W*H)

    w2 = weight.astype(jnp.float32)                                # (Wout, 5)
    b2 = bias.astype(jnp.float32).reshape(Wout, 1)                 # (Wout, 1)

    twout = _pick_wout_tile(Wout, C, S_in, S_out, _VMEM_BUDGET_BYTES)
    nwo = Wout // twout

    kernel = functools.partial(_branch_kernel, h=H, w=W)

    out_flat = pl.pallas_call(
        kernel,
        out_shape=jax.ShapeDtypeStruct((B, Wout, S_out), jnp.float32),
        grid_spec=pltpu.PrefetchScalarGridSpec(
            num_scalar_prefetch=0,
            grid=(B, nwo),
            in_specs=[
                pl.BlockSpec((1, C, S_in), lambda b, jo: (b, 0, 0)),
                pl.BlockSpec((twout, C), lambda b, jo: (jo, 0)),
                pl.BlockSpec((twout, 1), lambda b, jo: (jo, 0)),
            ],
            out_specs=pl.BlockSpec((1, twout, S_out), lambda b, jo: (b, jo, 0)),
        ),
        compiler_params=pltpu.CompilerParams(
            dimension_semantics=("parallel", "parallel"),
        ),
        cost_estimate=pl.CostEstimate(
            flops=2 * B * Wout * C * S_in,
            transcendentals=0,
            bytes_accessed=4 * (B * nwo * C * S_in
                                + B * Wout * (C + 1)
                                + B * Wout * S_out),
        ),
    )(a, w2, b2)

    # Free reshape into the module's output layout (B, w, W+2, H).
    return out_flat.reshape(B, Wout, Wp, H)


def _reference(x, weight, bias):
    x_pad = jnp.pad(x, ((0, 0), (0, 0), (0, 0), (1, 1)))
    xp = jnp.transpose(x_pad, (0, 3, 2, 1))                        # (B, W+2, H, C)
    y = jnp.einsum("bwhc,oc->bwho", xp, weight,
                   precision=jax.lax.Precision.HIGHEST) + bias
    return jnp.transpose(y, (0, 3, 1, 2))                          # (B, w, W+2, H)


if __name__ == "__main__":
    key = jax.random.PRNGKey(0)
    k_x, k_w, k_b = jax.random.split(key, 3)

    B, C, H, Win = 2, 5, 16, 16   # channel dim must be 5 (Linear(5, w))
    hidden = 32                   # w

    x = jax.random.normal(k_x, (B, C, H, Win), dtype=jnp.float32)
    # Deterministic init mimicking nn.Linear default (uniform +/- 1/sqrt(in)).
    bound = 1.0 / jnp.sqrt(5.0)
    weight = jax.random.uniform(k_w, (hidden, C), jnp.float32, -bound, bound)
    bias = jax.random.uniform(k_b, (hidden,), jnp.float32, -bound, bound)

    out = jax.block_until_ready(branch_net_forward(x, weight, bias))

    ref = _reference(x, weight, bias)
    assert out.shape == (B, hidden, Win + 2, H), out.shape
    assert jnp.allclose(out, ref, atol=1e-5, rtol=1e-5), float(
        jnp.max(jnp.abs(out - ref)))

    print("KERNEL_OK")
</pallas_src>

<mosaic_0001>
module attributes {stable_mosaic.version = 11 : i64} {
  func.func @_branch_kernel(%arg0: i32, %arg1: i32, %arg2: memref<1x5x256xf32, #tpu.memory_space<vmem>>, %arg3: memref<32x5xf32, #tpu.memory_space<vmem>>, %arg4: memref<32x1xf32, #tpu.memory_space<vmem>>, %arg5: memref<1x32x288xf32, #tpu.memory_space<vmem>>) attributes {dimension_semantics = [#tpu.dimension_semantics<parallel>, #tpu.dimension_semantics<parallel>], iteration_bounds = array<i64: 2, 1>, scalar_prefetch = 0 : i64, scratch_operands = 0 : i64, tpu.core_type = #tpu.core_type<tc>, window_params = [{transform_indices = @transform_0, window_bounds = array<i64: 1, 5, 256>}, {transform_indices = @transform_1, window_bounds = array<i64: 32, 5>}, {transform_indices = @transform_2, window_bounds = array<i64: 32, 1>}, {transform_indices = @transform_3, window_bounds = array<i64: 1, 32, 288>}]} {
    %c0 = arith.constant 0 : index
    %c0_0 = arith.constant 0 : index
    %0 = vector.load %arg3[%c0, %c0_0] : memref<32x5xf32, #tpu.memory_space<vmem>>, vector<32x5xf32>
    %c0_1 = arith.constant 0 : index
    %c0_2 = arith.constant 0 : index
    %c0_3 = arith.constant 0 : index
    %1 = vector.load %arg2[%c0_1, %c0_2, %c0_3] : memref<1x5x256xf32, #tpu.memory_space<vmem>>, vector<1x5x256xf32>
    %2 = vector.shape_cast %1 : vector<1x5x256xf32> to vector<5x256xf32>
    %cst = arith.constant dense<0.000000e+00> : vector<32x256xf32>
    %3 = tpu.matmul %0, %2, %cst {dimension_numbers = #tpu.dot_dimension_numbers<[1], [0], [0], [1], [0, 0, 1, 1], [], []>} : vector<32x5xf32>, vector<5x256xf32>, vector<32x256xf32> -> vector<32x256xf32>
    %c0_4 = arith.constant 0 : index
    %c0_5 = arith.constant 0 : index
    %4 = vector.load %arg4[%c0_4, %c0_5] : memref<32x1xf32, #tpu.memory_space<vmem>>, vector<32x1xf32>
    %5 = vector.shape_cast %4 : vector<32x1xf32> to vector<32x1xf32>
    %6 = vector.broadcast %5 : vector<32x1xf32> to vector<32x16xf32>
    %c0_6 = arith.constant 0 : index
    %c0_7 = arith.constant 0 : index
    %c0_8 = arith.constant 0 : index
    %7 = vector.load %arg5[%c0_6, %c0_7, %c0_8] : memref<1x32x288xf32, #tpu.memory_space<vmem>>, vector<1x32x16xf32>
    %8 = vector.shape_cast %7 : vector<1x32x16xf32> to vector<32x16xf32>
    %9 = vector.shape_cast %6 : vector<32x16xf32> to vector<1x32x16xf32>
    tpu.vector_store %arg5[%c0_6, %c0_7, %c0_8], %9 {strides = array<i32>} : memref<1x32x288xf32, #tpu.memory_space<vmem>>, vector<1x32x16xf32>,
    %c0_9 = arith.constant 0 : index
    %c0_10 = arith.constant 0 : index
    %c272 = arith.constant 272 : index
    %10 = vector.load %arg5[%c0_9, %c0_10, %c272] : memref<1x32x288xf32, #tpu.memory_space<vmem>>, vector<1x32x16xf32>
    %11 = vector.shape_cast %10 : vector<1x32x16xf32> to vector<32x16xf32>
    %12 = vector.shape_cast %6 : vector<32x16xf32> to vector<1x32x16xf32>
    tpu.vector_store %arg5[%c0_9, %c0_10, %c272], %12 {strides = array<i32>} : memref<1x32x288xf32, #tpu.memory_space<vmem>>, vector<1x32x16xf32>,
    %13 = vector.broadcast %4 : vector<32x1xf32> to vector<32x256xf32>
    %14 = arith.addf %3, %13 : vector<32x256xf32>
    %c0_11 = arith.constant 0 : index
    %c0_12 = arith.constant 0 : index
    %c16 = arith.constant 16 : index
    %15 = vector.load %arg5[%c0_11, %c0_12, %c16] : memref<1x32x288xf32, #tpu.memory_space<vmem>>, vector<1x32x256xf32>
    %16 = vector.shape_cast %15 : vector<1x32x256xf32> to vector<32x256xf32>
    %17 = vector.shape_cast %14 : vector<32x256xf32> to vector<1x32x256xf32>
    tpu.vector_store %arg5[%c0_11, %c0_12, %c16], %17 {strides = array<i32>} : memref<1x32x288xf32, #tpu.memory_space<vmem>>, vector<1x32x256xf32>,
    return
  }
  func.func @transform_0(%arg0: i32, %arg1: i32) -> (i32, i32, i32) {
    %c0_i32 = arith.constant 0 : i32
    %c0_i32_0 = arith.constant 0 : i32
    %c0_i32_1 = arith.constant 0 : i32
    return %arg0, %c0_i32, %c0_i32_0 : i32, i32, i32
  }
  func.func @transform_1(%arg0: i32, %arg1: i32) -> (i32, i32) {
    %c0_i32 = arith.constant 0 : i32
    %c0_i32_0 = arith.constant 0 : i32
    return %arg1, %c0_i32 : i32, i32
  }
  func.func @transform_2(%arg0: i32, %arg1: i32) -> (i32, i32) {
    %c0_i32 = arith.constant 0 : i32
    %c0_i32_0 = arith.constant 0 : i32
    return %arg1, %c0_i32 : i32, i32
  }
  func.func @transform_3(%arg0: i32, %arg1: i32) -> (i32, i32, i32) {
    %c0_i32 = arith.constant 0 : i32
    %c0_i32_0 = arith.constant 0 : i32
    return %arg0, %arg1, %c0_i32 : i32, i32, i32
  }
}

</mosaic_0001>

<llo_original>
// kernel: branch_net_forward.1
$region0: #{branch_net_forward.1}
  #allocation0 [shape = 'u32[]', space=smem, size = 0x4, offset = 0x4, fixed_abs, tag = 'smem constant byte address 0x4 - core index']
  #allocation1 [shape = 'u32[72,128]{1,0:T(1,128)}', space=vmem, size = 0x9000, scoped, tag = 'internal scratch']
  %s0 = inlined_call_operand.vmem [shape: f32[2,5,256], index: 0, kind: input, shape index: {}]
  %s1 = inlined_call_operand.vmem [shape: f32[32,5], index: 1, kind: input, shape index: {}]
  %s2 = inlined_call_operand.vmem [shape: f32[32,1], index: 2, kind: input, shape index: {}]
  %s3 = inlined_call_operand.vmem [shape: f32[2,32,288], index: 3, kind: output, shape index: {}]
  %s4 = sld [smem:[#allocation0]]
  $region45: #{branch_net_forward.1} parent=0
    _
  %s6 = ssub.s32 1, %s4
  %s7 = scalar_select 0, %s6, %s4
  loop: start=0, step=1, limit=4
  $region2: #{branch_net_forward.1} parent=0 // loop_pre_header
    _
  $region3: #{branch_net_forward.1} parent=0 // loop_header
    %s9 = sphi 0, %s13
    %p10 = scmp.ge.s32.totalorder %s9, 4
    %s16 = sphi 0, %s28
    %s17 = sphi 0, %s24
    %s18 = sphi 0, %s16
    %s19 = sphi 0, %s17
    %s20 = sphi 0, %s18
    %s21 = sphi 0, %s19
    %s31 = sphi 0, %s33
    %s34 = sphi 0, %s31
    %s35 = sphi 0, %s34
    %s51 = sphi 0, %s35
    %s57 = sphi 0, %s59
    %s60 = sphi 0, %s57
    %s61 = sphi 0, %s60
    %s77 = sphi 0, %s61
    %s83 = sphi 0, %s85
    %s86 = sphi 0, %s83
    %s87 = sphi 0, %s86
    %s103 = sphi 0, %s87
    %s111 = sphi 0, %s113
    %s114 = sphi 0, %s111
    %s115 = sphi 0, %s114
    %s131 = sphi 0, %s115
  $region4: #{branch_net_forward.1} parent=0 // loop_header_branch
    %12 = sbr.rel (%p10) target = $region8
  $region5: #{branch_net_forward.1} parent=0 // loop_body
    %s14 = ssub.s32 %s9, 1
    %s15 = ssub.s32 %s9, 2
    %s22 = sadd.s32 1, %s17
    %p23 = scmp.ge.s32.totalorder %s22, 1
    %s24 = scalar_select %p23, 0, %s22
    %s25 = sadd.s32 1, %s16
    %s26 = scalar_select %p23, %s25, %s16
    %p27 = scmp.ge.s32.totalorder %s26, 2
    %s28 = scalar_select %p27, 0, %s26
    %s29 = ssub.s32 %s16, %s28
    %p30 = scmp.eq.s32.totalorder %s29, 0
    %s32 = sadd.s32 %s31, 1
    %s33 = scalar_select %p30, %s31, %s32
    %p36 = pneg %p30
    %p37 = scmp.eq.s32.totalorder %s9, 1
    %p38 = por %p36, %p37
    %p39 = scmp.ne.s32.totalorder %s31, %s34
    %p40 = scmp.eq.s32.totalorder %s9, 0
    %p41 = por %p39, %p40
    %p42 = scmp.ne.s32.totalorder %s31, %s34
    %p43 = scmp.eq.s32.totalorder %s14, 1
    %p44 = por %p42, %p43
    %p45 = scmp.ne.s32.totalorder %s34, %s35
    %p46 = scmp.eq.s32.totalorder %s14, 0
    %p47 = por %p45, %p46
    %p48 = scmp.ne.s32.totalorder %s34, %s35
    %p49 = scmp.eq.s32.totalorder %s15, 1
    %p50 = por %p48, %p49
    %p52 = scmp.ne.s32.totalorder %s35, %s51
    %p53 = scmp.eq.s32.totalorder %s15, 0
    %p54 = por %p52, %p53
    %s55 = ssub.s32 %s17, %s24
    %p56 = scmp.eq.s32.totalorder %s55, 0
    %s58 = sadd.s32 %s57, 1
    %s59 = scalar_select %p56, %s57, %s58
    %p62 = pneg %p56
    %p63 = scmp.eq.s32.totalorder %s9, 1
    %p64 = por %p62, %p63
    %p65 = scmp.ne.s32.totalorder %s57, %s60
    %p66 = scmp.eq.s32.totalorder %s9, 0
    %p67 = por %p65, %p66
    %p68 = scmp.ne.s32.totalorder %s57, %s60
    %p69 = scmp.eq.s32.totalorder %s14, 1
    %p70 = por %p68, %p69
    %p71 = scmp.ne.s32.totalorder %s60, %s61
    %p72 = scmp.eq.s32.totalorder %s14, 0
    %p73 = por %p71, %p72
    %p74 = scmp.ne.s32.totalorder %s60, %s61
    %p75 = scmp.eq.s32.totalorder %s15, 1
    %p76 = por %p74, %p75
    %p78 = scmp.ne.s32.totalorder %s61, %s77
    %p79 = scmp.eq.s32.totalorder %s15, 0
    %p80 = por %p78, %p79
    %s81 = ssub.s32 %s17, %s24
    %p82 = scmp.eq.s32.totalorder %s81, 0
    %s84 = sadd.s32 %s83, 1
    %s85 = scalar_select %p82, %s83, %s84
    %p88 = pneg %p82
    %p89 = scmp.eq.s32.totalorder %s9, 1
    %p90 = por %p88, %p89
    %p91 = scmp.ne.s32.totalorder %s83, %s86
    %p92 = scmp.eq.s32.totalorder %s9, 0
    %p93 = por %p91, %p92
    %p94 = scmp.ne.s32.totalorder %s83, %s86
    %p95 = scmp.eq.s32.totalorder %s14, 1
    %p96 = por %p94, %p95
    %p97 = scmp.ne.s32.totalorder %s86, %s87
    %p98 = scmp.eq.s32.totalorder %s14, 0
    %p99 = por %p97, %p98
    %p100 = scmp.ne.s32.totalorder %s86, %s87
    %p101 = scmp.eq.s32.totalorder %s15, 1
    %p102 = por %p100, %p101
    %p104 = scmp.ne.s32.totalorder %s87, %s103
    %p105 = scmp.eq.s32.totalorder %s15, 0
    %p106 = por %p104, %p105
    %s107 = ssub.s32 %s16, %s28
    %s108 = ssub.s32 %s17, %s24
    %s109 = sor.u32 %s107, %s108
    %p110 = scmp.eq.s32.totalorder %s109, 0
    %s112 = sadd.s32 %s111, 1
    %s113 = scalar_select %p110, %s111, %s112
    %p116 = pneg %p110
    %p117 = scmp.eq.s32.totalorder %s9, 1
    %p118 = por %p116, %p117
    %p119 = scmp.ne.s32.totalorder %s111, %s114
    %p120 = scmp.eq.s32.totalorder %s9, 0
    %p121 = por %p119, %p120
    %p122 = scmp.ne.s32.totalorder %s111, %s114
    %p123 = scmp.eq.s32.totalorder %s14, 1
    %p124 = por %p122, %p123
    %p125 = scmp.ne.s32.totalorder %s114, %s115
    %p126 = scmp.eq.s32.totalorder %s14, 0
    %p127 = por %p125, %p126
    %p128 = scmp.ne.s32.totalorder %s114, %s115
    %p129 = scmp.eq.s32.totalorder %s15, 1
    %p130 = por %p128, %p129
    %p132 = scmp.ne.s32.totalorder %s115, %s131
    %p133 = scmp.eq.s32.totalorder %s15, 0
    %p134 = por %p132, %p133
    %p135 = scmp.le.s32.totalorder 1, %s9
    %p136 = scmp.lt.s32.totalorder %s9, 3
    %p137 = pnand %p135, %p136
    %p138 = pneg %p137
    // Predicated region
    $region9: #{branch_net_forward.1} parent=5 // pred_check
      _
    $region10: #{branch_net_forward.1} parent=5 // pred_check_branch
      %140 = sbr.rel (%p137) target = $region12
    $region11: #{branch_net_forward.1} parent=5 // pred_region
      %s141 = ssub.s32 %s9, 1
      // Predicated region
      $region13: #{branch_net_forward.1} parent=11 // pred_check
        %p142 = pneg %p73
      $region14: #{branch_net_forward.1} parent=11 // pred_check_branch
        %144 = sbr.rel (%p142) target = $region16
      $region15: #{branch_net_forward.1} parent=11 // pred_region
        %s145 = smul.u32 4, %s19
        %p146 = scmp.lt.s32.totalorder %s145, 3
        %s147 = scalar_select %p146, %s145, 3
        %s148 = smul.addr %s147, 8
        %s149 = scalar_lea.vmem %s1, %s148
        %s150 = smul.u32 4, %s19
      $region16: #{branch_net_forward.1} parent=11 // pred_fallthru
        _
      // Predicated region
      $region17: #{branch_net_forward.1} parent=11 // pred_check
        %p151 = pneg %p99
      $region18: #{branch_net_forward.1} parent=11 // pred_check_branch
        %153 = sbr.rel (%p151) target = $region20
      $region19: #{branch_net_forward.1} parent=11 // pred_region
        %s154 = smul.u32 4, %s19
        %p155 = scmp.lt.s32.totalorder %s154, 3
        %s156 = scalar_select %p155, %s154, 3
        %s157 = smul.addr %s156, 8
        %s158 = scalar_lea.vmem %s2, %s157
        %s159 = smul.u32 4, %s19
      $region20: #{branch_net_forward.1} parent=11 // pred_fallthru
        _
    $region12: #{branch_net_forward.1} parent=5 // pred_fallthru
      _
    %p160 = scmp.lt.s32.totalorder %s9, 2
    // Predicated region
    $region21: #{branch_net_forward.1} parent=5 // pred_check
      %p161 = pneg %p160
    $region22: #{branch_net_forward.1} parent=5 // pred_check_branch
      %163 = sbr.rel (%p161) target = $region24
    $region23: #{branch_net_forward.1} parent=5 // pred_region
      // Predicated region
      $region25: #{branch_net_forward.1} parent=23 // pred_check
        %p164 = pneg %p41
      $region26: #{branch_net_forward.1} parent=23 // pred_check_branch
        %166 = sbr.rel (%p164) target = $region28
      $region27: #{branch_net_forward.1} parent=23 // pred_region
        %p167 = scmp.lt.s32.totalorder %s16, 1
        %s168 = scalar_select %p167, %s16, 1
        %s169 = smul.addr %s168, 2
        %s170 = smul.addr %s169, 8
        %s171 = scalar_lea.vmem %s0, %s170
      $region28: #{branch_net_forward.1} parent=23 // pred_fallthru
        _
    $region24: #{branch_net_forward.1} parent=5 // pred_fallthru
      _
    %p172 = scmp.le.s32.totalorder 1, %s9
    %p173 = scmp.lt.s32.totalorder %s9, 3
    %p174 = pnand %p172, %p173
    %p175 = pneg %p174
    // Predicated region
    $region29: #{branch_net_forward.1} parent=5 // pred_check
      _
    $region30: #{branch_net_forward.1} parent=5 // pred_check_branch
      %177 = sbr.rel (%p174) target = $region32
    $region31: #{branch_net_forward.1} parent=5 // pred_region
      %s178 = ssub.s32 %s9, 1
      %p179 = scmp.lt.s32.totalorder %s18, 1
      %s180 = scalar_select %p179, %s18, 1
      %s181 = smul.addr %s180, 2
      %s182 = smul.addr %s181, 8
      %s183 = scalar_lea.vmem %s0, %s182
      %p184 = pneg %p47
      %p185 = pneg %p44
      %s186 = smul.u32 4, %s19
      %p187 = scmp.lt.s32.totalorder %s186, 3
      %s188 = scalar_select %p187, %s186, 3
      %s189 = smul.addr %s188, 8
      %s190 = scalar_lea.vmem %s1, %s189
      %p191 = pneg %p73
      %p192 = pneg %p70
      %s193 = smul.u32 4, %s19
      %p194 = scmp.lt.s32.totalorder %s193, 3
      %s195 = scalar_select %p194, %s193, 3
      %s196 = smul.addr %s195, 8
      %s197 = scalar_lea.vmem %s2, %s196
      %p198 = pneg %p99
      %p199 = pneg %p96
      %p200 = pneg %p127
      %p201 = pneg %p124
      %s202 = smul.u32 4, %s19
      %p203 = scmp.lt.s32.totalorder %s18, 1
      %s204 = scalar_select %p203, %s18, 1
      %p205 = scmp.lt.s32.totalorder %s202, 3
      %s206 = scalar_select %p205, %s202, 3
      %s207 = smul.addr %s206, 3
      %s208 = smul.addr %s204, 12
      %s209 = sadd.s32 %s207, %s208
      %s210 = smul.addr %s209, 8
      %s211 = scalar_lea.vmem %s3, %s210
      %p212 = scmp.lt.s32.totalorder %s18, 1
      %s213 = scalar_select %p212, %s18, 1
      %s214 = smul.addr %s213, 2
      %s215 = smul.addr %s214, 8
      %s216 = scalar_lea.vmem %s0, %s215
      %s217 = smul.u32 4, %s19
      %p218 = scmp.lt.s32.totalorder %s217, 3
      %s219 = scalar_select %p218, %s217, 3
      %s220 = smul.addr %s219, 8
      %s221 = scalar_lea.vmem %s1, %s220
      %s222 = smul.u32 4, %s19
      %s223 = smul.u32 4, %s19
      %p224 = scmp.lt.s32.totalorder %s223, 3
      %s225 = scalar_select %p224, %s223, 3
      %s226 = smul.addr %s225, 8
      %s227 = scalar_lea.vmem %s2, %s226
      %s228 = smul.u32 4, %s19
      %s229 = smul.u32 4, %s19
      %p230 = scmp.lt.s32.totalorder %s18, 1
      %s231 = scalar_select %p230, %s18, 1
      %p232 = scmp.lt.s32.totalorder %s229, 3
      %s233 = scalar_select %p232, %s229, 3
      %s234 = smul.addr %s233, 3
      %s235 = smul.addr %s231, 12
      %s236 = sadd.s32 %s234, %s235
      %s237 = smul.addr %s236, 8
      %s238 = scalar_lea.vmem %s3, %s237
      %s239 = smul.u32 4, %s19
      %v240 = vld [vmem:[%s221] sm:$0xff]
      %v241 = vld [vmem:[%s221 + $0x8] sm:$0xff]
      %v242 = vld [vmem:[%s221 + $0x10] sm:$0xff]
      %v243 = vld [vmem:[%s221 + $0x18] sm:$0xff]
      %v244 = vld [vmem:[%s216] sm:$0x1f]
      %v245 = vld [vmem:[%s216 + $0x8] sm:$0x1f]
      %v246 = vld [vmem:[%s227] sm:$0xff]
      %v247 = vld [vmem:[%s227 + $0x8] sm:$0xff]
      %v248 = vld [vmem:[%s227 + $0x10] sm:$0xff]
      %v249 = vld [vmem:[%s227 + $0x18] sm:$0xff]
      %251 = vset.pattern.permute.xlu0 0
      %252 = vperm.xlu0 %251, %v246
      %v253 = vpop.permute.xlu0 %252
      %256 = vset.pattern.permute.xlu0 0
      %257 = vperm.xlu0 %256, %v247
      %v258 = vpop.permute.xlu0 %257
      %261 = vset.pattern.permute.xlu0 0
      %262 = vperm.xlu0 %261, %v248
      %v263 = vpop.permute.xlu0 %262
      %266 = vset.pattern.permute.xlu0 0
      %267 = vperm.xlu0 %266, %v249
      %v268 = vpop.permute.xlu0 %267
      %vm270 = vcmask 130048
      %271 = vst.msk [vmem:[%s238] sm:$0xff] %vm270, %v253
      %272 = vst.msk [vmem:[%s238 + $0x18] sm:$0xff] %vm270, %v258
      %273 = vst.msk [vmem:[%s238 + $0x30] sm:$0xff] %vm270, %v263
      %274 = vst.msk [vmem:[%s238 + $0x48] sm:$0xff] %vm270, %v268
      %vm275 = vcmask 261248
      %276 = vst.msk [vmem:[%s238 + $0x10] sm:$0xff] %vm275, %v253
      %277 = vst.msk [vmem:[%s238 + $0x28] sm:$0xff] %vm275, %v258
      %278 = vst.msk [vmem:[%s238 + $0x40] sm:$0xff] %vm275, %v263
      %279 = vst.msk [vmem:[%s238 + $0x58] sm:$0xff] %vm275, %v268
      %vm280 = vcmask 39936
      %v282 = vsel %vm280, %v240, 0
      %v285 = vsel %vm280, %v241, 0
      %v288 = vsel %vm280, %v242, 0
      %v291 = vsel %vm280, %v243, 0
      %vm293 = vcmask 1044480
      %v295 = vsel %vm293, %v244, 0
      %v298 = vsel %vm293, %v245, 0
      %300 = vmatpush.msra.mxu0 0.0
      %301 = vmatpush.msra.mxu0 0.0
      %302 = vmatpush.msra.mxu0 0.0
      %303 = vmatpush.msra.mxu0 0.0
      %304 = vmatpush.msra.mxu0 0.0
      %305 = vmatpush.msra.mxu0 0.0
      %306 = vmatpush.msra.mxu0 0.0
      %307 = vmatpush.msra.mxu0 0.0
      %308 = vmatpush.msra.mxu0 0.0
      %309 = vmatpush.msra.mxu0 0.0
      %310 = vmatpush.msra.mxu0 0.0
      %311 = vmatpush.msra.mxu0 0.0
      %312 = vmatpush.msra.mxu0 0.0
      %313 = vmatpush.msra.mxu0 0.0
      %314 = vmatpush.msra.mxu0 0.0
      %315 = vmatpush.msra.mxu0 %v295
      %316 = vmatmul.f32.gmra.mxu0 %v282
      %v317 = vpop.f32.mrf.mxu0
      %v318 = vadd.f32 %v253, %v317
      %319 = vmatmul.f32.gmra.mxu0 %v285
      %v320 = vpop.f32.mrf.mxu0
      %v321 = vadd.f32 %v258, %v320
      %322 = vmatmul.f32.gmra.mxu0 %v288
      %v323 = vpop.f32.mrf.mxu0
      %v324 = vadd.f32 %v263, %v323
      %325 = vmatmul.f32.gmra.mxu0 %v291
      %v326 = vpop.f32.mrf.mxu0
      %v327 = vadd.f32 %v268, %v326
      %328 = vdwg.mxu0
      %329 = vmatpush.msra.mxu0 0.0
      %330 = vmatpush.msra.mxu0 0.0
      %331 = vmatpush.msra.mxu0 0.0
      %332 = vmatpush.msra.mxu0 0.0
      %333 = vmatpush.msra.mxu0 0.0
      %334 = vmatpush.msra.mxu0 0.0
      %335 = vmatpush.msra.mxu0 0.0
      %336 = vmatpush.msra.mxu0 0.0
      %337 = vmatpush.msra.mxu0 0.0
      %338 = vmatpush.msra.mxu0 0.0
      %339 = vmatpush.msra.mxu0 0.0
      %340 = vmatpush.msra.mxu0 0.0
      %341 = vmatpush.msra.mxu0 0.0
      %342 = vmatpush.msra.mxu0 0.0
      %343 = vmatpush.msra.mxu0 0.0
      %344 = vmatpush.msra.mxu0 %v298
      %345 = vmatmul.f32.gmra.mxu0 %v282
      %v346 = vpop.f32.mrf.mxu0
      %v347 = vadd.f32 %v253, %v346
      %348 = vmatmul.f32.gmra.mxu0 %v285
      %v349 = vpop.f32.mrf.mxu0
      %v350 = vadd.f32 %v258, %v349
      %351 = vmatmul.f32.gmra.mxu0 %v288
      %v352 = vpop.f32.mrf.mxu0
      %v353 = vadd.f32 %v263, %v352
      %354 = vmatmul.f32.gmra.mxu0 %v291
      %v355 = vpop.f32.mrf.mxu0
      %v356 = vadd.f32 %v268, %v355
      %357 = vdwg.mxu0
      %366 = vrot.lane.b32.xlu0 %v318, 16
      %v367 = vpop.permute.xlu0 %366
      %368 = vrot.lane.b32.xlu0 %v347, 16
      %v369 = vpop.permute.xlu0 %368
      %370 = vrot.lane.b32.xlu0 %v321, 16
      %v371 = vpop.permute.xlu0 %370
      %372 = vrot.lane.b32.xlu0 %v350, 16
      %v373 = vpop.permute.xlu0 %372
      %374 = vrot.lane.b32.xlu0 %v324, 16
      %v375 = vpop.permute.xlu0 %374
      %376 = vrot.lane.b32.xlu0 %v353, 16
      %v377 = vpop.permute.xlu0 %376
      %378 = vrot.lane.b32.xlu0 %v327, 16
      %v379 = vpop.permute.xlu0 %378
      %380 = vrot.lane.b32.xlu0 %v356, 16
      %v381 = vpop.permute.xlu0 %380
      %v382 = vsel %vm270, %v367, %v369
      %v383 = vsel %vm270, %v371, %v373
      %v384 = vsel %vm270, %v375, %v377
      %v385 = vsel %vm270, %v379, %v381
      %vm398 = vcmask 1047680
      %399 = vst.msk [vmem:[%s238] sm:$0xff] %vm398, %v367
      %400 = vst [vmem:[%s238 + $0x8] sm:$0xff] %v382
      %401 = vst.msk [vmem:[%s238 + $0x10] sm:$0xff] %vm270, %v369
      %402 = vst.msk [vmem:[%s238 + $0x18] sm:$0xff] %vm398, %v371
      %403 = vst [vmem:[%s238 + $0x20] sm:$0xff] %v383
      %404 = vst.msk [vmem:[%s238 + $0x28] sm:$0xff] %vm270, %v373
      %405 = vst.msk [vmem:[%s238 + $0x30] sm:$0xff] %vm398, %v375
      %406 = vst [vmem:[%s238 + $0x38] sm:$0xff] %v384
      %407 = vst.msk [vmem:[%s238 + $0x40] sm:$0xff] %vm270, %v377
      %408 = vst.msk [vmem:[%s238 + $0x48] sm:$0xff] %vm398, %v379
      %409 = vst [vmem:[%s238 + $0x50] sm:$0xff] %v385
      %410 = vst.msk [vmem:[%s238 + $0x58] sm:$0xff] %vm270, %v381
      %s411 = smul.u32 4, %s19
      %p412 = scmp.lt.s32.totalorder %s18, 1
      %s413 = scalar_select %p412, %s18, 1
      %p414 = scmp.lt.s32.totalorder %s411, 3
      %s415 = scalar_select %p414, %s411, 3
      %s416 = smul.addr %s415, 3
      %s417 = smul.addr %s413, 12
      %s418 = sadd.s32 %s416, %s417
      %s419 = smul.addr %s418, 8
      %s420 = scalar_lea.vmem %s3, %s419
      // Predicated region
      $region33: #{branch_net_forward.1} parent=31 // pred_check
        %p421 = pneg %p124
      $region34: #{branch_net_forward.1} parent=31 // pred_check_branch
        %423 = sbr.rel (%p421) target = $region36
      $region35: #{branch_net_forward.1} parent=31 // pred_region
        %s424 = smul.u32 4, %s19
      $region36: #{branch_net_forward.1} parent=31 // pred_fallthru
        _
    $region32: #{branch_net_forward.1} parent=5 // pred_fallthru
      _
    %p425 = scmp.le.s32.totalorder 2, %s9
    // Predicated region
    $region37: #{branch_net_forward.1} parent=5 // pred_check
      %p426 = pneg %p425
    $region38: #{branch_net_forward.1} parent=5 // pred_check_branch
      %428 = sbr.rel (%p426) target = $region40
    $region39: #{branch_net_forward.1} parent=5 // pred_region
      %s429 = ssub.s32 %s9, 2
      // Predicated region
      $region41: #{branch_net_forward.1} parent=39 // pred_check
        %p430 = pneg %p130
      $region42: #{branch_net_forward.1} parent=39 // pred_check_branch
        %432 = sbr.rel (%p430) target = $region44
      $region43: #{branch_net_forward.1} parent=39 // pred_region
        %s433 = smul.u32 4, %s21
        %p434 = scmp.lt.s32.totalorder %s20, 1
        %s435 = scalar_select %p434, %s20, 1
        %p436 = scmp.lt.s32.totalorder %s433, 3
        %s437 = scalar_select %p436, %s433, 3
        %s438 = smul.addr %s437, 3
        %s439 = smul.addr %s435, 12
        %s440 = sadd.s32 %s438, %s439
        %s441 = smul.addr %s440, 8
        %s442 = scalar_lea.vmem %s3, %s441
      $region44: #{branch_net_forward.1} parent=39 // pred_fallthru
        _
    $region40: #{branch_net_forward.1} parent=5 // pred_fallthru
      _
  $region6: #{branch_net_forward.1} parent=0 // loop_footer
    %s13 = sadd.s32 1, %s9
  $region7: #{branch_net_forward.1} parent=0 // loop_footer_branch
    %8 = sbr.rel target = $region3
  $region8: #{branch_net_forward.1} parent=0 // loop_exit
    _

</llo_original>
